<compile_context>
chip_gen: v5e
topology: v5e:2x2
jax: 0.10.0
libtpu: 0.0.40
codegen_flags: <defaults>
</compile_context>

<pallas_src>
import jax
import jax.numpy as jnp
from jax.experimental import pallas as pl
from jax.experimental.pallas import tpu as pltpu


def _round_up(x, m):
    return ((x + m - 1) // m) * m


def _ie_linear_kernel(x_ref, w_ref, b_ref, o_ref, acc_ref):
    # x_ref : (TILE_ROWS, TK)   rows of the (rows_pad, D_pad) input
    # w_ref : (TK, H_pad)       IE-folded Linear weight K-slab
    # b_ref : (1, H_pad)        Linear bias (broadcast over rows)
    # o_ref : (TILE_ROWS, H_pad)
    # acc_ref: (TILE_ROWS, H_pad) f32 accumulator scratch
    k = pl.program_id(1)

    @pl.when(k == 0)
    def _():
        acc_ref[...] = jnp.zeros_like(acc_ref)

    acc_ref[...] += jnp.dot(
        x_ref[...], w_ref[...], preferred_element_type=jnp.float32
    )

    @pl.when(k == pl.num_programs(1) - 1)
    def _():
        o_ref[...] = (acc_ref[...] + b_ref[...]).astype(o_ref.dtype)


def multivariate_ie_layer(x, ie_weights, w, b, *, tile_rows=256, max_tk=512,
                          compute_dtype=None):
    """forward(x) = Linear(x * IE_weights).

    x: (B, S, D) f32; ie_weights: (D,); w: (D, H); b: (H,).  Returns (B, S, H) f32.
    compute_dtype: set to jnp.bfloat16 on v6e/v7x for MXU-peak matmul (acc stays f32).
    """
    B, S, D = x.shape
    H = w.shape[1]
    rows = B * S

    # Fold the IE scaling into the weight once (exact in f32).
    w_scaled = (ie_weights[:, None] * w).astype(jnp.float32)

    # ---- TPU-friendly padded shapes ------------------------------------
    # Lane-dense output: pad H to a multiple of 128 (extra cols are zeros).
    H_pad = _round_up(H, 128)
    # Row tile: multiple of 16 (bf16 sublane safe), no larger than needed.
    tile_rows = max(16, _round_up(min(tile_rows, _round_up(rows, 16)), 16))
    rows_pad = _round_up(rows, tile_rows)
    # K tile: whole D when small; otherwise 512-wide slabs with accumulation.
    if D <= max_tk:
        tk, D_pad = D, D
    else:
        tk = max_tk                      # multiple of 128
        D_pad = _round_up(D, tk)

    x2 = x.reshape(rows, D).astype(jnp.float32)
    x2 = jnp.pad(x2, ((0, rows_pad - rows), (0, D_pad - D)))
    w_p = jnp.pad(w_scaled, ((0, D_pad - D), (0, H_pad - H)))
    b_p = jnp.pad(b.astype(jnp.float32), (0, H_pad - H)).reshape(1, H_pad)

    if compute_dtype is not None:
        x2 = x2.astype(compute_dtype)
        w_p = w_p.astype(compute_dtype)

    grid = (rows_pad // tile_rows, D_pad // tk)

    # TODO(synk): for very large tile_rows/H on v7x (64 MiB VMEM) set
    # pltpu.CompilerParams(vmem_limit_bytes=...) and cap the tile accordingly.
    out2 = pl.pallas_call(
        _ie_linear_kernel,
        out_shape=jax.ShapeDtypeStruct((rows_pad, H_pad), jnp.float32),
        grid=grid,
        in_specs=[
            pl.BlockSpec((tile_rows, tk), lambda i, k: (i, k)),   # x row slab
            pl.BlockSpec((tk, H_pad), lambda i, k: (k, 0)),       # folded weight
            pl.BlockSpec((1, H_pad), lambda i, k: (0, 0)),        # bias
        ],
        out_specs=pl.BlockSpec((tile_rows, H_pad), lambda i, k: (i, 0)),
        scratch_shapes=[pltpu.VMEM((tile_rows, H_pad), jnp.float32)],
        compiler_params=pltpu.CompilerParams(
            dimension_semantics=("parallel", "arbitrary"),
        ),
    )(x2, w_p, b_p)

    return out2[:rows, :H].reshape(B, S, H)


if __name__ == "__main__":
    # Small shapes consistent with a multivariate series: (batch, seq, input_dim)
    B, S, D, H = 2, 8, 16, 32

    key = jax.random.PRNGKey(0)
    kx, kw, kb = jax.random.split(key, 3)

    x = jax.random.normal(kx, (B, S, D), dtype=jnp.float32)

    # IE_weights: initialized to ones, exactly as torch.nn.init.ones_ in __init__.
    ie_weights = jnp.ones((D,), dtype=jnp.float32)

    # Deterministic inner "model" (Linear D -> H) parameters.
    w = jax.random.normal(kw, (D, H), dtype=jnp.float32) * 0.1
    b = jax.random.normal(kb, (H,), dtype=jnp.float32) * 0.1

    out = multivariate_ie_layer(x, ie_weights, w, b)
    out = jax.block_until_ready(out)

    # Pure-JAX reference: model(x * IE_weights)
    ref = jnp.einsum("bsd,dh->bsh", x * ie_weights, w) + b
    assert out.shape == (B, S, H)
    assert jnp.allclose(out, ref, atol=1e-5, rtol=1e-5), "mismatch vs reference"

    print("KERNEL_OK")
</pallas_src>

<mosaic_0001>
module attributes {stable_mosaic.version = 11 : i64} {
  func.func @_ie_linear_kernel(%arg0: i32, %arg1: i32, %arg2: memref<16x16xf32, #tpu.memory_space<vmem>>, %arg3: memref<16x128xf32, #tpu.memory_space<vmem>>, %arg4: memref<1x128xf32, #tpu.memory_space<vmem>>, %arg5: memref<16x128xf32, #tpu.memory_space<vmem>>, %arg6: memref<16x128xf32, #tpu.memory_space<vmem>>) attributes {dimension_semantics = [#tpu.dimension_semantics<parallel>, #tpu.dimension_semantics<arbitrary>], iteration_bounds = array<i64: 1, 1>, scalar_prefetch = 0 : i64, scratch_operands = 1 : i64, tpu.core_type = #tpu.core_type<tc>, window_params = [{transform_indices = @transform_0, window_bounds = array<i64: 16, 16>}, {transform_indices = @transform_1, window_bounds = array<i64: 16, 128>}, {pipeline_mode = #tpu.pipeline_mode<synchronous>, transform_indices = @transform_2, window_bounds = array<i64: 1, 128>}, {transform_indices = @transform_3, window_bounds = array<i64: 16, 128>}]} {
    %c0_i32 = arith.constant 0 : i32
    %0 = arith.cmpi eq, %arg1, %c0_i32 : i32
    %1 = arith.extui %0 : i1 to i32
    %c0_i32_0 = arith.constant 0 : i32
    %2 = arith.cmpi ne, %1, %c0_i32_0 : i32
    scf.if %2 {
      %cst_10 = arith.constant 0.000000e+00 : f32
      %12 = vector.broadcast %cst_10 : f32 to vector<16x128xf32>
      %c0_11 = arith.constant 0 : index
      %c0_12 = arith.constant 0 : index
      %13 = vector.load %arg6[%c0_11, %c0_12] : memref<16x128xf32, #tpu.memory_space<vmem>>, vector<16x128xf32>
      tpu.vector_store %arg6[%c0_11, %c0_12], %12 {strides = array<i32>} : memref<16x128xf32, #tpu.memory_space<vmem>>, vector<16x128xf32>,
    } else {
    }
    %c0 = arith.constant 0 : index
    %c0_1 = arith.constant 0 : index
    %3 = vector.load %arg6[%c0, %c0_1] : memref<16x128xf32, #tpu.memory_space<vmem>>, vector<16x128xf32>
    %c0_2 = arith.constant 0 : index
    %c0_3 = arith.constant 0 : index
    %4 = vector.load %arg2[%c0_2, %c0_3] : memref<16x16xf32, #tpu.memory_space<vmem>>, vector<16x16xf32>
    %c0_4 = arith.constant 0 : index
    %c0_5 = arith.constant 0 : index
    %5 = vector.load %arg3[%c0_4, %c0_5] : memref<16x128xf32, #tpu.memory_space<vmem>>, vector<16x128xf32>
    %cst = arith.constant dense<0.000000e+00> : vector<16x128xf32>
    %6 = tpu.matmul %4, %5, %cst {dimension_numbers = #tpu.dot_dimension_numbers<[1], [0], [0], [1], [0, 0, 1, 1], [], []>} : vector<16x16xf32>, vector<16x128xf32>, vector<16x128xf32> -> vector<16x128xf32>
    %7 = arith.addf %3, %6 : vector<16x128xf32>
    %c0_6 = arith.constant 0 : index
    %c0_7 = arith.constant 0 : index
    %8 = vector.load %arg6[%c0_6, %c0_7] : memref<16x128xf32, #tpu.memory_space<vmem>>, vector<16x128xf32>
    tpu.vector_store %arg6[%c0_6, %c0_7], %7 {strides = array<i32>} : memref<16x128xf32, #tpu.memory_space<vmem>>, vector<16x128xf32>,
    %c0_i32_8 = arith.constant 0 : i32
    %9 = arith.cmpi eq, %arg1, %c0_i32_8 : i32
    %10 = arith.extui %9 : i1 to i32
    %c0_i32_9 = arith.constant 0 : i32
    %11 = arith.cmpi ne, %10, %c0_i32_9 : i32
    scf.if %11 {
      %c0_10 = arith.constant 0 : index
      %c0_11 = arith.constant 0 : index
      %12 = vector.load %arg6[%c0_10, %c0_11] : memref<16x128xf32, #tpu.memory_space<vmem>>, vector<16x128xf32>
      %c0_12 = arith.constant 0 : index
      %c0_13 = arith.constant 0 : index
      %13 = vector.load %arg4[%c0_12, %c0_13] : memref<1x128xf32, #tpu.memory_space<vmem>>, vector<1x128xf32>
      %14 = vector.broadcast %13 : vector<1x128xf32> to vector<16x128xf32>
      %15 = arith.addf %12, %14 : vector<16x128xf32>
      %c0_14 = arith.constant 0 : index
      %c0_15 = arith.constant 0 : index
      %16 = vector.load %arg5[%c0_14, %c0_15] : memref<16x128xf32, #tpu.memory_space<vmem>>, vector<16x128xf32>
      tpu.vector_store %arg5[%c0_14, %c0_15], %15 {strides = array<i32>} : memref<16x128xf32, #tpu.memory_space<vmem>>, vector<16x128xf32>,
    } else {
    }
    return
  }
  func.func @transform_0(%arg0: i32, %arg1: i32) -> (i32, i32) {
    %c0_i32 = arith.constant 0 : i32
    return %arg0, %arg1 : i32, i32
  }
  func.func @transform_1(%arg0: i32, %arg1: i32) -> (i32, i32) {
    %c0_i32 = arith.constant 0 : i32
    %c0_i32_0 = arith.constant 0 : i32
    return %arg1, %c0_i32 : i32, i32
  }
  func.func @transform_2(%arg0: i32, %arg1: i32) -> (i32, i32) {
    %c0_i32 = arith.constant 0 : i32
    %c0_i32_0 = arith.constant 0 : i32
    %c0_i32_1 = arith.constant 0 : i32
    return %c0_i32, %c0_i32_0 : i32, i32
  }
  func.func @transform_3(%arg0: i32, %arg1: i32) -> (i32, i32) {
    %c0_i32 = arith.constant 0 : i32
    %c0_i32_0 = arith.constant 0 : i32
    return %arg0, %c0_i32 : i32, i32
  }
}

</mosaic_0001>

<llo_original>
// kernel: tpu_custom_call.1
$region0: #{tpu_custom_call.1}
  #allocation0 [shape = 'u32[]', space=smem, size = 0x4, offset = 0x4, fixed_abs, tag = 'smem constant byte address 0x4 - core index']
  #allocation1 [shape = 'u32[72,128]{1,0:T(1,128)}', space=vmem, size = 0x9000, scoped, tag = 'internal scratch']
  #allocation2 [shape = 'f32[16,128]{1,0:T(8,128)}', space=vmem, size = 0x2000, scoped, tag = 'scratch operand']
  %s0 = inlined_call_operand.hbm [shape: f32[16,16], index: 0, kind: input, shape index: {}]
  %s1 = inlined_call_operand.hbm [shape: f32[16,128], index: 1, kind: input, shape index: {}]
  %s2 = inlined_call_operand.vmem [shape: f32[1,128], index: 2, kind: input, shape index: {}]
  %s3 = inlined_call_operand.hbm [shape: f32[16,128], index: 3, kind: output, shape index: {}]
  %s4 = sld [smem:[#allocation0]]
  $region38: #{tpu_custom_call.1} parent=0
    _
  %s6 = ssub.s32 1, %s4
  %s7 = scalar_select 0, %s6, %s4
  $region1: #{tpu_custom_call.1} parent=0
    #allocation3 [shape = 'u8[8192]{0}', space=vmem, size = 0x2000, scoped, tag = 'input window, operand 0, single buffered']
    #allocation4 [shape = 's32[1]{0}', space=sflag, size = 0x4, scoped, tag = 'scoped memory for tpu_custom_call.1']
    #allocation5 [shape = 's32[1]{0}', space=sflag, size = 0x4, scoped, tag = 'scoped memory for tpu_custom_call.1']
    #allocation6 [shape = 'u8[8192]{0}', space=vmem, size = 0x2000, scoped, tag = 'input window, operand 1, single buffered']
    #allocation7 [shape = 's32[1]{0}', space=sflag, size = 0x4, scoped, tag = 'scoped memory for tpu_custom_call.1']
    #allocation8 [shape = 'u8[8192]{0}', space=vmem, size = 0x2000, scoped, tag = 'output window, operand 0, single buffered']
    %8 = vsyncpa [#allocation4], 0
    %9 = vsyncpa [#allocation7], 0
    %10 = vsyncpa [#allocation5], 0
    // Predicated region
    $region2: #{tpu_custom_call.1} parent=1 // pred_check
      _
    $region3: #{tpu_custom_call.1} parent=1 // pred_check_branch
      %12 = sbr.rel (0) target = $region5
    $region4: #{tpu_custom_call.1} parent=1 // pred_region
      %14 = vsyncadd [#allocation4], 0
      %s15 = sshll.u32 %s0, 4
      %s16 = int_to_ptr.hbm [resolvable:$true] %s15
      %s17 = sshll.u32 [#allocation3], 4
      %s18 = int_to_ptr.vmem [resolvable:$true] %s17
      %23 = dma.hbm_to_vmem [thread:$0]  %s16, 256, %s18, [#allocation4], 128, 128, 8
    $region5: #{tpu_custom_call.1} parent=1 // pred_fallthru
      _
    // Predicated region
    $region6: #{tpu_custom_call.1} parent=1 // pred_check
      _
    $region7: #{tpu_custom_call.1} parent=1 // pred_check_branch
      %25 = sbr.rel (0) target = $region9
    $region8: #{tpu_custom_call.1} parent=1 // pred_region
      %27 = vsyncadd [#allocation7], 0
      %s28 = sshll.u32 %s1, 4
      %s29 = int_to_ptr.hbm [resolvable:$true] %s28
      %s30 = sshll.u32 [#allocation6], 4
      %s31 = int_to_ptr.vmem [resolvable:$true] %s30
      %36 = dma.hbm_to_vmem [thread:$0]  %s29, 256, %s31, [#allocation7], 128, 128, 8
    $region9: #{tpu_custom_call.1} parent=1 // pred_fallthru
      _
    // Predicated region
    $region10: #{tpu_custom_call.1} parent=1 // pred_check
      _
    $region11: #{tpu_custom_call.1} parent=1 // pred_check_branch
      %38 = sbr.rel (0) target = $region13
    $region12: #{tpu_custom_call.1} parent=1 // pred_region
      _
    $region13: #{tpu_custom_call.1} parent=1 // pred_fallthru
      _
    // Predicated region
    $region14: #{tpu_custom_call.1} parent=1 // pred_check
      _
    $region15: #{tpu_custom_call.1} parent=1 // pred_check_branch
      %40 = sbr.rel (0) target = $region17
    $region16: #{tpu_custom_call.1} parent=1 // pred_region
      %42 = dma.done [#allocation4], 256
    $region17: #{tpu_custom_call.1} parent=1 // pred_fallthru
      _
    // Predicated region
    $region18: #{tpu_custom_call.1} parent=1 // pred_check
      _
    $region19: #{tpu_custom_call.1} parent=1 // pred_check_branch
      %44 = sbr.rel (0) target = $region21
    $region20: #{tpu_custom_call.1} parent=1 // pred_region
      %46 = dma.done [#allocation7], 256
    $region21: #{tpu_custom_call.1} parent=1 // pred_fallthru
      _
    %p47 = scmp.eq.s32.totalorder 0, 0
    // Predicated region
    $region22: #{tpu_custom_call.1} parent=1 // pred_check
      %p48 = pneg %p47
    $region23: #{tpu_custom_call.1} parent=1 // pred_check_branch
      %50 = sbr.rel (%p48) target = $region25
    $region24: #{tpu_custom_call.1} parent=1 // pred_region
      %51 = vst [vmem:[#allocation2] sm:$0xff] 0.0
      %52 = vst [vmem:[#allocation2 + $0x8] sm:$0xff] 0.0
    $region25: #{tpu_custom_call.1} parent=1 // pred_fallthru
      _
    %v53 = vld [vmem:[#allocation2] sm:$0xff]
    %v54 = vld [vmem:[#allocation2 + $0x8] sm:$0xff]
    %v55 = vld [vmem:[#allocation3] sm:$0xff]
    %v56 = vld [vmem:[#allocation3 + $0x8] sm:$0xff]
    %v57 = vld [vmem:[#allocation6] sm:$0xff]
    %v58 = vld [vmem:[#allocation6 + $0x8] sm:$0xff]
    %vm59 = vcmask 130048
    %v61 = vsel %vm59, %v55, 0
    %v64 = vsel %vm59, %v56, 0
    %66 = vmatpush.msra.mxu0 0.0
    %67 = vmatpush.msra.mxu0 0.0
    %68 = vmatpush.msra.mxu0 0.0
    %69 = vmatpush.msra.mxu0 0.0
    %70 = vmatpush.msra.mxu0 0.0
    %71 = vmatpush.msra.mxu0 0.0
    %72 = vmatpush.msra.mxu0 0.0
    %73 = vmatpush.msra.mxu0 0.0
    %74 = vmatpush.msra.mxu0 0.0
    %75 = vmatpush.msra.mxu0 0.0
    %76 = vmatpush.msra.mxu0 0.0
    %77 = vmatpush.msra.mxu0 0.0
    %78 = vmatpush.msra.mxu0 0.0
    %79 = vmatpush.msra.mxu0 0.0
    %80 = vmatpush.msra.mxu0 %v58
    %81 = vmatpush.msra.mxu0 %v57
    %82 = vmatmul.f32.gmra.mxu0 %v61
    %v83 = vpop.f32.mrf.mxu0
    %v84 = vadd.f32 0.0, %v83
    %85 = vmatmul.f32.gmra.mxu0 %v64
    %v86 = vpop.f32.mrf.mxu0
    %v87 = vadd.f32 0.0, %v86
    %88 = vdwg.mxu0
    %v89 = vadd.f32 %v53, %v84
    %v90 = vadd.f32 %v54, %v87
    %91 = vst [vmem:[#allocation2] sm:$0xff] %v89
    %92 = vst [vmem:[#allocation2 + $0x8] sm:$0xff] %v90
    // Predicated region
    $region26: #{tpu_custom_call.1} parent=1 // pred_check
      %p93 = pneg %p47
    $region27: #{tpu_custom_call.1} parent=1 // pred_check_branch
      %95 = sbr.rel (%p93) target = $region29
    $region28: #{tpu_custom_call.1} parent=1 // pred_region
      %v96 = vld [vmem:[#allocation2] sm:$0xff]
      %v97 = vld [vmem:[#allocation2 + $0x8] sm:$0xff]
      %v98 = vld [vmem:[%s2] sm:$0x1]
      %v100 = vperm.slane %v98, 0
      %v102 = vadd.f32 %v96, %v100
      %v103 = vadd.f32 %v97, %v100
      %104 = vst [vmem:[#allocation8] sm:$0xff] %v102
      %105 = vst [vmem:[#allocation8 + $0x8] sm:$0xff] %v103
    $region29: #{tpu_custom_call.1} parent=1 // pred_fallthru
      _
    // Predicated region
    $region30: #{tpu_custom_call.1} parent=1 // pred_check
      _
    $region31: #{tpu_custom_call.1} parent=1 // pred_check_branch
      %107 = sbr.rel (0) target = $region33
    $region32: #{tpu_custom_call.1} parent=1 // pred_region
      %109 = vsyncadd [#allocation5], 0
      %s110 = sshll.u32 [#allocation8], 4
      %s111 = int_to_ptr.vmem [resolvable:$true] %s110
      %s112 = sshll.u32 %s3, 4
      %s113 = int_to_ptr.hbm [resolvable:$true] %s112
      %118 = dma.vmem_to_hbm [thread:$0]  %s111, 256, %s113, [#allocation5], 128, 128, 8
    $region33: #{tpu_custom_call.1} parent=1 // pred_fallthru
      _
    // Predicated region
    $region34: #{tpu_custom_call.1} parent=1 // pred_check
      _
    $region35: #{tpu_custom_call.1} parent=1 // pred_check_branch
      %120 = sbr.rel (0) target = $region37
    $region36: #{tpu_custom_call.1} parent=1 // pred_region
      %122 = dma.done [#allocation5], 256
    $region37: #{tpu_custom_call.1} parent=1 // pred_fallthru
      _
    %123 = vsyncpa [#allocation4], 1
    %124 = vsyncpa [#allocation7], 1
    %125 = vsyncpa [#allocation5], 1

</llo_original>
